<compile_context>
chip_gen: v6e
topology: v6e:2x2x1
jax: 0.10.0
libtpu: 0.0.40
codegen_flags: <defaults>
</compile_context>

<pallas_src>
import functools

import jax
import jax.numpy as jnp
from jax.experimental import pallas as pl
from jax.experimental.pallas import tpu as pltpu


def _round_up(x: int, m: int) -> int:
    return (x + m - 1) // m * m


def _linear_kernel(x_ref, w_ref, b_ref, o_ref, acc_ref):
    """Computes one (tm, tn) output tile; K is the innermost grid axis."""
    k = pl.program_id(2)

    @pl.when(k == 0)
    def _():
        # Fold bias into accumulator init: broadcast (1, tn) -> (tm, tn)
        # exactly once per output tile, no extra finalize VPU pass.
        acc_ref[...] = jnp.broadcast_to(
            b_ref[...].astype(jnp.float32), acc_ref.shape
        )

    # bf16 operands, f32 accumulation on the MXU.
    acc_ref[...] += jnp.dot(
        x_ref[...], w_ref[...], preferred_element_type=jnp.float32
    )

    @pl.when(k == pl.num_programs(2) - 1)
    def _():
        o_ref[...] = acc_ref[...].astype(o_ref.dtype)


@functools.partial(jax.jit, static_argnames=("tm", "tn", "tk", "compute_dtype"))
def dlut_forward(x, w, b, *, tm=256, tn=256, tk=512,
                 compute_dtype=jnp.bfloat16):
    """Pallas forward for SimpleDLUTModel: y = x @ w + b.

    x: (B, in_features) f32
    w: (in_features, hidden) f32
    b: (1, hidden) f32
    returns: (B, hidden) f32
    """
    B, In = x.shape
    In_w, H = w.shape
    assert In == In_w and b.shape == (1, H)

    # Lane-dense padding: lane axes -> multiples of 128, sublane -> 8.
    # Zero-padding along K contributes nothing to the dot, so the result is
    # exact after slicing.
    tm = min(tm, _round_up(B, 8))
    tn = min(tn, _round_up(H, 128))
    tk = min(tk, _round_up(In, 128))
    M = _round_up(B, tm)
    N = _round_up(H, tn)
    K = _round_up(In, tk)

    xp = jnp.pad(x, ((0, M - B), (0, K - In))).astype(compute_dtype)
    wp = jnp.pad(w, ((0, K - In), (0, N - H))).astype(compute_dtype)
    bp = jnp.pad(b, ((0, 0), (0, N - H))).astype(jnp.float32)

    grid = (M // tm, N // tn, K // tk)
    bytes_per = jnp.dtype(compute_dtype).itemsize
    cost = pl.CostEstimate(
        flops=2 * M * N * K,
        transcendentals=0,
        bytes_accessed=(M * K + K * N) * bytes_per + M * N * 4 + N * 4,
    )

    out = pl.pallas_call(
        _linear_kernel,
        out_shape=jax.ShapeDtypeStruct((M, N), jnp.float32),
        grid_spec=pltpu.PrefetchScalarGridSpec(
            num_scalar_prefetch=0,
            grid=grid,
            in_specs=[
                pl.BlockSpec((tm, tk), lambda i, j, k: (i, k)),
                pl.BlockSpec((tk, tn), lambda i, j, k: (k, j)),
                pl.BlockSpec((1, tn), lambda i, j, k: (0, j)),
            ],
            out_specs=pl.BlockSpec((tm, tn), lambda i, j, k: (i, j)),
            scratch_shapes=[pltpu.VMEM((tm, tn), jnp.float32)],
        ),
        compiler_params=pltpu.CompilerParams(
            dimension_semantics=("parallel", "parallel", "arbitrary"),
            vmem_limit_bytes=32 * 1024 * 1024,
        ),
        cost_estimate=cost,
    )(xp, wp, bp)

    return out[:B, :H]


def init_params(key, input_size, hidden_size):
    """Deterministic PyTorch-Linear-style init: U(-1/sqrt(in), 1/sqrt(in))."""
    kw, kb = jax.random.split(key)
    bound = 1.0 / jnp.sqrt(jnp.float32(input_size))
    w = jax.random.uniform(
        kw, (input_size, hidden_size), jnp.float32, minval=-bound, maxval=bound
    )
    b = jax.random.uniform(
        kb, (1, hidden_size), jnp.float32, minval=-bound, maxval=bound
    )
    return w, b


if __name__ == "__main__":
    input_size = 16
    hidden_size = 32
    batch = 8

    key = jax.random.PRNGKey(0)
    k_x, k_p = jax.random.split(key)

    x = jax.random.normal(k_x, (batch, input_size), jnp.float32)
    w, b = init_params(k_p, input_size, hidden_size)

    y = dlut_forward(x, w, b)
    y = jax.block_until_ready(y)

    # Reference with matching bf16-operand / f32-accumulate numerics.
    y_ref_bf16 = jnp.dot(
        x.astype(jnp.bfloat16), w.astype(jnp.bfloat16),
        preferred_element_type=jnp.float32,
    ) + b
    # Looser sanity check vs full-f32 reference.
    y_ref_f32 = x @ w + b

    assert y.shape == (batch, hidden_size)
    assert jnp.allclose(y, y_ref_bf16, atol=1e-4, rtol=1e-4)
    assert jnp.allclose(y, y_ref_f32, atol=5e-2, rtol=5e-2)

    print("KERNEL_OK")
</pallas_src>

<mosaic_0001>
module attributes {stable_mosaic.version = 11 : i64} {
  func.func @_linear_kernel(%arg0: i32, %arg1: i32, %arg2: i32, %arg3: memref<8x128xbf16, #tpu.memory_space<vmem>>, %arg4: memref<128x128xbf16, #tpu.memory_space<vmem>>, %arg5: memref<1x128xf32, #tpu.memory_space<vmem>>, %arg6: memref<8x128xf32, #tpu.memory_space<vmem>>, %arg7: memref<8x128xf32, #tpu.memory_space<vmem>>) attributes {dimension_semantics = [#tpu.dimension_semantics<parallel>, #tpu.dimension_semantics<parallel>, #tpu.dimension_semantics<arbitrary>], iteration_bounds = array<i64: 1, 1, 1>, scalar_prefetch = 0 : i64, scratch_operands = 1 : i64, tpu.core_type = #tpu.core_type<tc>, window_params = [{transform_indices = @transform_0, window_bounds = array<i64: 8, 128>}, {transform_indices = @transform_1, window_bounds = array<i64: 128, 128>}, {transform_indices = @transform_2, window_bounds = array<i64: 1, 128>}, {transform_indices = @transform_3, window_bounds = array<i64: 8, 128>}]} {
    %c0_i32 = arith.constant 0 : i32
    %0 = arith.cmpi eq, %arg2, %c0_i32 : i32
    %1 = arith.extui %0 : i1 to i32
    %c0_i32_0 = arith.constant 0 : i32
    %2 = arith.cmpi ne, %1, %c0_i32_0 : i32
    scf.if %2 {
      %c0_10 = arith.constant 0 : index
      %c0_11 = arith.constant 0 : index
      %12 = vector.load %arg5[%c0_10, %c0_11] : memref<1x128xf32, #tpu.memory_space<vmem>>, vector<1x128xf32>
      %13 = vector.shape_cast %12 : vector<1x128xf32> to vector<1x128xf32>
      %14 = vector.broadcast %13 : vector<1x128xf32> to vector<8x128xf32>
      %c0_12 = arith.constant 0 : index
      %c0_13 = arith.constant 0 : index
      %15 = vector.load %arg7[%c0_12, %c0_13] : memref<8x128xf32, #tpu.memory_space<vmem>>, vector<8x128xf32>
      tpu.vector_store %arg7[%c0_12, %c0_13], %14 {strides = array<i32>} : memref<8x128xf32, #tpu.memory_space<vmem>>, vector<8x128xf32>,
    } else {
    }
    %c0 = arith.constant 0 : index
    %c0_1 = arith.constant 0 : index
    %3 = vector.load %arg7[%c0, %c0_1] : memref<8x128xf32, #tpu.memory_space<vmem>>, vector<8x128xf32>
    %c0_2 = arith.constant 0 : index
    %c0_3 = arith.constant 0 : index
    %4 = vector.load %arg3[%c0_2, %c0_3] : memref<8x128xbf16, #tpu.memory_space<vmem>>, vector<8x128xbf16>
    %c0_4 = arith.constant 0 : index
    %c0_5 = arith.constant 0 : index
    %5 = vector.load %arg4[%c0_4, %c0_5] : memref<128x128xbf16, #tpu.memory_space<vmem>>, vector<128x128xbf16>
    %cst = arith.constant dense<0.000000e+00> : vector<8x128xf32>
    %6 = tpu.matmul %4, %5, %cst {dimension_numbers = #tpu.dot_dimension_numbers<[1], [0], [0], [1], [0, 0, 1, 1], [], []>} : vector<8x128xbf16>, vector<128x128xbf16>, vector<8x128xf32> -> vector<8x128xf32>
    %7 = arith.addf %3, %6 : vector<8x128xf32>
    %c0_6 = arith.constant 0 : index
    %c0_7 = arith.constant 0 : index
    %8 = vector.load %arg7[%c0_6, %c0_7] : memref<8x128xf32, #tpu.memory_space<vmem>>, vector<8x128xf32>
    tpu.vector_store %arg7[%c0_6, %c0_7], %7 {strides = array<i32>} : memref<8x128xf32, #tpu.memory_space<vmem>>, vector<8x128xf32>,
    %c0_i32_8 = arith.constant 0 : i32
    %9 = arith.cmpi eq, %arg2, %c0_i32_8 : i32
    %10 = arith.extui %9 : i1 to i32
    %c0_i32_9 = arith.constant 0 : i32
    %11 = arith.cmpi ne, %10, %c0_i32_9 : i32
    scf.if %11 {
      %c0_10 = arith.constant 0 : index
      %c0_11 = arith.constant 0 : index
      %12 = vector.load %arg7[%c0_10, %c0_11] : memref<8x128xf32, #tpu.memory_space<vmem>>, vector<8x128xf32>
      %c0_12 = arith.constant 0 : index
      %c0_13 = arith.constant 0 : index
      %13 = vector.load %arg6[%c0_12, %c0_13] : memref<8x128xf32, #tpu.memory_space<vmem>>, vector<8x128xf32>
      tpu.vector_store %arg6[%c0_12, %c0_13], %12 {strides = array<i32>} : memref<8x128xf32, #tpu.memory_space<vmem>>, vector<8x128xf32>,
    } else {
    }
    return
  }
  func.func @transform_0(%arg0: i32, %arg1: i32, %arg2: i32) -> (i32, i32) {
    %c0_i32 = arith.constant 0 : i32
    return %arg0, %arg2 : i32, i32
  }
  func.func @transform_1(%arg0: i32, %arg1: i32, %arg2: i32) -> (i32, i32) {
    %c0_i32 = arith.constant 0 : i32
    return %arg2, %arg1 : i32, i32
  }
  func.func @transform_2(%arg0: i32, %arg1: i32, %arg2: i32) -> (i32, i32) {
    %c0_i32 = arith.constant 0 : i32
    %c0_i32_0 = arith.constant 0 : i32
    return %c0_i32, %arg1 : i32, i32
  }
  func.func @transform_3(%arg0: i32, %arg1: i32, %arg2: i32) -> (i32, i32) {
    %c0_i32 = arith.constant 0 : i32
    return %arg0, %arg1 : i32, i32
  }
}

</mosaic_0001>

<llo_original>
// kernel: dlut_forward.1
$region0: #{dlut_forward.1}
  #allocation0 [shape = 'u32[]', space=smem, size = 0x4, offset = 0x4, fixed_abs, tag = 'smem constant byte address 0x4 - core index']
  #allocation1 [shape = 'u32[144,128]{1,0:T(1,128)}', space=vmem, size = 0x12000, scoped, tag = 'internal scratch']
  #allocation2 [shape = 'f32[8,128]{1,0:T(8,128)}', space=vmem, size = 0x1000, scoped, tag = 'scratch operand']
  %s0 = inlined_call_operand.vmem [shape: bf16[8,128], index: 0, kind: input, shape index: {}]
  %s1 = inlined_call_operand.vmem [shape: bf16[128,128], index: 1, kind: input, shape index: {}]
  %s2 = inlined_call_operand.vmem [shape: f32[1,128], index: 2, kind: input, shape index: {}]
  %s3 = inlined_call_operand.hbm [shape: f32[8,128], index: 3, kind: output, shape index: {}]
  %s4 = sld [smem:[#allocation0]]
  $region30: #{dlut_forward.1} parent=0
    _
  %s6 = ssub.s32 1, %s4
  %s7 = scalar_select 0, %s6, %s4
  $region1: #{dlut_forward.1} parent=0
    #allocation3 [shape = 'u8[4096]{0}', space=vmem, size = 0x1000, scoped, tag = 'output window, operand 0, single buffered']
    #allocation4 [shape = 's32[1]{0}', space=sflag, size = 0x4, scoped, tag = 'scoped memory for dlut_forward.1']
    %8 = vsyncpa [#allocation4], 0
    // Predicated region
    $region2: #{dlut_forward.1} parent=1 // pred_check
      _
    $region3: #{dlut_forward.1} parent=1 // pred_check_branch
      %10 = sbr.rel (0) target = $region5
    $region4: #{dlut_forward.1} parent=1 // pred_region
      _
    $region5: #{dlut_forward.1} parent=1 // pred_fallthru
      _
    // Predicated region
    $region6: #{dlut_forward.1} parent=1 // pred_check
      _
    $region7: #{dlut_forward.1} parent=1 // pred_check_branch
      %12 = sbr.rel (0) target = $region9
    $region8: #{dlut_forward.1} parent=1 // pred_region
      _
    $region9: #{dlut_forward.1} parent=1 // pred_fallthru
      _
    // Predicated region
    $region10: #{dlut_forward.1} parent=1 // pred_check
      _
    $region11: #{dlut_forward.1} parent=1 // pred_check_branch
      %14 = sbr.rel (0) target = $region13
    $region12: #{dlut_forward.1} parent=1 // pred_region
      _
    $region13: #{dlut_forward.1} parent=1 // pred_fallthru
      _
    %p16 = scmp.eq.s32.totalorder 0, 0
    // Predicated region
    $region14: #{dlut_forward.1} parent=1 // pred_check
      %p17 = pneg %p16
    $region15: #{dlut_forward.1} parent=1 // pred_check_branch
      %19 = sbr.rel (%p17) target = $region17
    $region16: #{dlut_forward.1} parent=1 // pred_region
      %v20 = vld [vmem:[%s2] sm:$0x1]
      %v22 = vlaneseq
      %v23 = vshrl.u32 %v22, 7
      %v24 = vsub.s32 0, %v23
      %v25 = vrot.slane %v20, %v24
      %27 = vst [vmem:[#allocation2] sm:$0xff] %v25
    $region17: #{dlut_forward.1} parent=1 // pred_fallthru
      _
    %v28 = vld [vmem:[#allocation2] sm:$0xff]
    %v29 = vld [vmem:[%s0] sm:$0xf]
    %v30 = vld [vmem:[%s1] sm:$0xf]
    %v31 = vld [vmem:[%s1 + $0x4] sm:$0xf]
    %v32 = vld [vmem:[%s1 + $0x8] sm:$0xf]
    %v33 = vld [vmem:[%s1 + $0xc] sm:$0xf]
    %v34 = vld [vmem:[%s1 + $0x10] sm:$0xf]
    %v35 = vld [vmem:[%s1 + $0x14] sm:$0xf]
    %v36 = vld [vmem:[%s1 + $0x18] sm:$0xf]
    %v37 = vld [vmem:[%s1 + $0x1c] sm:$0xf]
    %v38 = vld [vmem:[%s1 + $0x20] sm:$0xf]
    %v39 = vld [vmem:[%s1 + $0x24] sm:$0xf]
    %v40 = vld [vmem:[%s1 + $0x28] sm:$0xf]
    %v41 = vld [vmem:[%s1 + $0x2c] sm:$0xf]
    %v42 = vld [vmem:[%s1 + $0x30] sm:$0xf]
    %v43 = vld [vmem:[%s1 + $0x34] sm:$0xf]
    %v44 = vld [vmem:[%s1 + $0x38] sm:$0xf]
    %v45 = vld [vmem:[%s1 + $0x3c] sm:$0xf]
    %v62 = vunpack.c.l.b16 %v30
    %v63 = vunpack.c.l.b16 %v31
    %v64 = vunpack.c.l.b16 %v32
    %v65 = vunpack.c.l.b16 %v33
    %v66 = vunpack.c.l.b16 %v34
    %v67 = vunpack.c.l.b16 %v35
    %v68 = vunpack.c.l.b16 %v36
    %v69 = vunpack.c.l.b16 %v37
    %v70 = vunpack.c.l.b16 %v38
    %v71 = vunpack.c.l.b16 %v39
    %v72 = vunpack.c.l.b16 %v40
    %v73 = vunpack.c.l.b16 %v41
    %v74 = vunpack.c.l.b16 %v42
    %v75 = vunpack.c.l.b16 %v43
    %v76 = vunpack.c.l.b16 %v44
    %v77 = vunpack.c.l.b16 %v45
    %v78 = vpack.c.b16 %v63, %v62
    %v79 = vpack.c.b16 %v65, %v64
    %v80 = vpack.c.b16 %v67, %v66
    %v81 = vpack.c.b16 %v69, %v68
    %v82 = vpack.c.b16 %v71, %v70
    %v83 = vpack.c.b16 %v73, %v72
    %v84 = vpack.c.b16 %v75, %v74
    %v85 = vpack.c.b16 %v77, %v76
    %94 = vmatprep.subr.bf16.mxu0 0
    %95 = vmatpush1.bf16.msra.mxu0 %v85
    %96 = vmatprep.subr.bf16.mxu0 0
    %97 = vmatpush1.bf16.msra.mxu0 %v84
    %98 = vmatprep.subr.bf16.mxu0 0
    %99 = vmatpush1.bf16.msra.mxu0 %v83
    %100 = vmatprep.subr.bf16.mxu0 0
    %101 = vmatpush1.bf16.msra.mxu0 %v82
    %102 = vmatprep.subr.bf16.mxu0 0
    %103 = vmatpush1.bf16.msra.mxu0 %v81
    %104 = vmatprep.subr.bf16.mxu0 0
    %105 = vmatpush1.bf16.msra.mxu0 %v80
    %106 = vmatprep.subr.bf16.mxu0 0
    %107 = vmatpush1.bf16.msra.mxu0 %v79
    %108 = vmatprep.subr.bf16.mxu0 0
    %109 = vmatpush1.bf16.msra.mxu0 %v78
    %110 = vmatprep.subr.bf16.mxu0 0
    %111 = vmatpush2.bf16.msra.mxu0 0
    %112 = vmatprep.subr.bf16.mxu0 0
    %113 = vmatpush2.bf16.msra.mxu0 0
    %114 = vmatprep.subr.bf16.mxu0 0
    %115 = vmatpush2.bf16.msra.mxu0 0
    %116 = vmatprep.subr.bf16.mxu0 0
    %117 = vmatpush2.bf16.msra.mxu0 0
    %118 = vmatprep.subr.bf16.mxu0 0
    %119 = vmatpush2.bf16.msra.mxu0 0
    %120 = vmatprep.subr.bf16.mxu0 0
    %121 = vmatpush2.bf16.msra.mxu0 0
    %122 = vmatprep.subr.bf16.mxu0 0
    %123 = vmatpush2.bf16.msra.mxu0 0
    %124 = vmatprep.subr.bf16.mxu0 0
    %125 = vmatpush2.bf16.msra.mxu0 0
    %126 = vmatprep.mubr.bf16.mxu0 0
    %127 = vmatmul.mubr.bf16.gmra.mxu0 %v29
    %v128 = vpop.f32.mrf.mxu0
    %v129 = vadd.f32 0.0, %v128
    %v130 = vpop.f32.mrf.mxu0
    %v131 = vpop.f32.mrf.mxu0
    %v132 = vpop.f32.mrf.mxu0
    %133 = vdwg.mxu0
    %v134 = vadd.f32 %v28, %v129
    %135 = vst [vmem:[#allocation2] sm:$0xff] %v134
    // Predicated region
    $region18: #{dlut_forward.1} parent=1 // pred_check
      %p136 = pneg %p16
    $region19: #{dlut_forward.1} parent=1 // pred_check_branch
      %138 = sbr.rel (%p136) target = $region21
    $region20: #{dlut_forward.1} parent=1 // pred_region
      %v139 = vld [vmem:[#allocation2] sm:$0xff]
      %140 = vst [vmem:[#allocation3] sm:$0xff] %v139
    $region21: #{dlut_forward.1} parent=1 // pred_fallthru
      _
    // Predicated region
    $region22: #{dlut_forward.1} parent=1 // pred_check
      _
    $region23: #{dlut_forward.1} parent=1 // pred_check_branch
      %142 = sbr.rel (0) target = $region25
    $region24: #{dlut_forward.1} parent=1 // pred_region
      %s144 = ssub.s32 128, 128
      %145 = vsyncadd [#allocation4], %s144
      %s147 = sshll.u32 [#allocation3], 4
      %s148 = int_to_ptr.vmem [resolvable:$true] %s147
      %150 = dma.vmem_to_hbm [thread:$0]  %s148, 128, %s3, [#allocation4]
    $region25: #{dlut_forward.1} parent=1 // pred_fallthru
      _
    // Predicated region
    $region26: #{dlut_forward.1} parent=1 // pred_check
      _
    $region27: #{dlut_forward.1} parent=1 // pred_check_branch
      %152 = sbr.rel (0) target = $region29
    $region28: #{dlut_forward.1} parent=1 // pred_region
      %153 = dma.done [#allocation4], 128
    $region29: #{dlut_forward.1} parent=1 // pred_fallthru
      _
    %154 = vsyncpa [#allocation4], 1

</llo_original>
